<compile_context>
chip_gen: v6e
topology: v6e:2x2x1
jax: 0.10.0
libtpu: 0.0.40
codegen_flags: <defaults>
</compile_context>

<pallas_src>
import jax
import jax.numpy as jnp
from jax.experimental import pallas as pl
from jax.experimental.pallas import tpu as pltpu

EPS = 1e-5


def _make_bn_kernel(num_shards, eps):
    """Build a kernel handling all shards per grid step (one C-tile per step)."""

    def kernel(*refs):
        x_refs = refs[0:num_shards]
        g_refs = refs[num_shards:2 * num_shards]
        b_refs = refs[2 * num_shards:3 * num_shards]
        o_refs = refs[3 * num_shards:4 * num_shards]
        for x_ref, g_ref, b_ref, o_ref in zip(x_refs, g_refs, b_refs, o_refs):
            x = x_ref[...].astype(jnp.float32)                    # (N, TC)
            mean = jnp.mean(x, axis=0, keepdims=True)             # (1, TC)
            centered = x - mean
            # Biased variance, two-pass (numerically robust) form.
            var = jnp.mean(centered * centered, axis=0, keepdims=True)
            scale = g_ref[...].astype(jnp.float32) * jax.lax.rsqrt(var + eps)
            beta = b_ref[...].astype(jnp.float32)
            # Single FMA per element on the output pass.
            o_ref[...] = (centered * scale + beta).astype(o_ref.dtype)

    return kernel


def _pick_lane_tile(C, N, S, max_lane_tile, vmem_budget_bytes):
    """Largest multiple-of-128 tile that divides C and fits the VMEM budget."""
    if C % 128 != 0:
        # Block last dim must be a multiple of 128 OR the full array extent.
        return C

    def step_bytes(t):
        # S shards x (input + output) x double-buffer x N x t, f32 worst case.
        return S * 2 * 2 * N * t * 4

    tc = 128
    while (tc * 2 <= max_lane_tile
           and C % (tc * 2) == 0
           and step_bytes(tc * 2) <= vmem_budget_bytes):
        tc *= 2
    return tc


def sharded_batch_norm(input_tensors, gammas, betas, *, eps=EPS,
                       max_lane_tile=1024,
                       vmem_budget_bytes=24 * 1024 * 1024):
    """input_tensors: list of (N, C) arrays (one per shard/device).
    gammas, betas: lists of (C,) per-shard affine params.
    Returns list of (N, C) normalized outputs."""
    S = len(input_tensors)
    N, C = input_tensors[0].shape
    for x in input_tensors:
        assert x.shape == (N, C) and x.dtype == input_tensors[0].dtype

    gammas2d = [jnp.asarray(g).reshape(1, C) for g in gammas]
    betas2d = [jnp.asarray(b).reshape(1, C) for b in betas]

    tc = _pick_lane_tile(C, N, S, max_lane_tile, vmem_budget_bytes)
    grid = (C // tc,)

    x_spec = pl.BlockSpec((N, tc), lambda c: (0, c))
    p_spec = pl.BlockSpec((1, tc), lambda c: (0, c))

    kernel = _make_bn_kernel(S, eps)

    out = pl.pallas_call(
        kernel,
        out_shape=tuple(
            jax.ShapeDtypeStruct((N, C), x.dtype) for x in input_tensors
        ),
        grid=grid,
        in_specs=[x_spec] * S + [p_spec] * S + [p_spec] * S,
        out_specs=tuple(x_spec for _ in range(S)),
        compiler_params=pltpu.CompilerParams(
            dimension_semantics=("parallel",),
        ),
    )(*input_tensors, *gammas2d, *betas2d)

    return list(out)


def _reference(input_tensors, gammas, betas, eps=EPS):
    outs = []
    for x, g, b in zip(input_tensors, gammas, betas):
        x32 = x.astype(jnp.float32)
        mean = jnp.mean(x32, axis=0, keepdims=True)
        var = jnp.mean((x32 - mean) ** 2, axis=0, keepdims=True)
        y = (x32 - mean) / jnp.sqrt(var + eps)
        y = y * jnp.asarray(g).reshape(1, -1) + jnp.asarray(b).reshape(1, -1)
        outs.append(y.astype(x.dtype))
    return outs


def _check(outs, refs, tol=1e-4):
    for o, r in zip(outs, refs):
        assert o.shape == r.shape and o.dtype == r.dtype
        assert float(jnp.max(jnp.abs(o.astype(jnp.float32) -
                                     r.astype(jnp.float32)))) < tol


if __name__ == "__main__":
    key = jax.random.PRNGKey(0)
    keys = jax.random.split(key, 8)

    # Case 1: typical ShardedBatchNorm config. C=32 < 128 -> single full block,
    # single grid step. BatchNorm1d init: weight (gamma)=1, bias (beta)=0.
    S, N, C = 2, 8, 32
    xs = [jax.random.normal(keys[i], (N, C), dtype=jnp.float32) for i in range(S)]
    gammas = [jnp.ones((C,), jnp.float32) for _ in range(S)]
    betas = [jnp.zeros((C,), jnp.float32) for _ in range(S)]
    outs = sharded_batch_norm(xs, gammas, betas)
    outs = [jax.block_until_ready(o) for o in outs]
    _check(outs, _reference(xs, gammas, betas))

    # Case 2: lane-dense multi-tile path (C % 128 == 0, forced 128-lane tiles,
    # grid=(2,)), non-trivial affine and non-zero mean inputs.
    S2, N2, C2 = 2, 16, 256
    xs2 = [2.0 + 3.0 * jax.random.normal(keys[2 + i], (N2, C2), dtype=jnp.float32)
           for i in range(S2)]
    gammas2 = [1.0 + 0.1 * jax.random.normal(keys[4 + i], (C2,), dtype=jnp.float32)
               for i in range(S2)]
    betas2 = [0.1 * jax.random.normal(keys[6 + i], (C2,), dtype=jnp.float32)
              for i in range(S2)]
    outs2 = sharded_batch_norm(xs2, gammas2, betas2, max_lane_tile=128)
    outs2 = [jax.block_until_ready(o) for o in outs2]
    _check(outs2, _reference(xs2, gammas2, betas2))

    print("KERNEL_OK")
</pallas_src>

<mosaic_0001>
module attributes {stable_mosaic.version = 11 : i64} {
  func.func @kernel(%arg0: i32, %arg1: memref<8x32xf32, #tpu.memory_space<vmem>>, %arg2: memref<8x32xf32, #tpu.memory_space<vmem>>, %arg3: memref<1x32xf32, #tpu.memory_space<vmem>>, %arg4: memref<1x32xf32, #tpu.memory_space<vmem>>, %arg5: memref<1x32xf32, #tpu.memory_space<vmem>>, %arg6: memref<1x32xf32, #tpu.memory_space<vmem>>, %arg7: memref<8x32xf32, #tpu.memory_space<vmem>>, %arg8: memref<8x32xf32, #tpu.memory_space<vmem>>) attributes {dimension_semantics = [#tpu.dimension_semantics<parallel>], iteration_bounds = array<i64: 1>, scalar_prefetch = 0 : i64, scratch_operands = 0 : i64, tpu.core_type = #tpu.core_type<tc>, window_params = [{transform_indices = @transform_0, window_bounds = array<i64: 8, 32>}, {transform_indices = @transform_1, window_bounds = array<i64: 8, 32>}, {transform_indices = @transform_2, window_bounds = array<i64: 1, 32>}, {transform_indices = @transform_3, window_bounds = array<i64: 1, 32>}, {transform_indices = @transform_4, window_bounds = array<i64: 1, 32>}, {transform_indices = @transform_5, window_bounds = array<i64: 1, 32>}, {transform_indices = @transform_6, window_bounds = array<i64: 8, 32>}, {transform_indices = @transform_7, window_bounds = array<i64: 8, 32>}]} {
    %c0 = arith.constant 0 : index
    %c0_0 = arith.constant 0 : index
    %0 = vector.load %arg1[%c0, %c0_0] : memref<8x32xf32, #tpu.memory_space<vmem>>, vector<8x32xf32>
    %cst = arith.constant dense<0.000000e+00> : vector<32xf32>
    %1 = vector.multi_reduction <add>, %0, %cst [0] : vector<8x32xf32> to vector<32xf32>
    %2 = vector.shape_cast %1 : vector<32xf32> to vector<1x32xf32>
    %cst_1 = arith.constant 8.000000e+00 : f32
    %3 = vector.broadcast %cst_1 : f32 to vector<1x32xf32>
    %4 = arith.divf %2, %3 : vector<1x32xf32>
    %5 = vector.broadcast %4 : vector<1x32xf32> to vector<8x32xf32>
    %6 = arith.subf %0, %5 : vector<8x32xf32>
    %7 = arith.mulf %6, %6 : vector<8x32xf32>
    %cst_2 = arith.constant dense<0.000000e+00> : vector<32xf32>
    %8 = vector.multi_reduction <add>, %7, %cst_2 [0] : vector<8x32xf32> to vector<32xf32>
    %9 = vector.shape_cast %8 : vector<32xf32> to vector<1x32xf32>
    %cst_3 = arith.constant 8.000000e+00 : f32
    %10 = vector.broadcast %cst_3 : f32 to vector<1x32xf32>
    %11 = arith.divf %9, %10 : vector<1x32xf32>
    %c0_4 = arith.constant 0 : index
    %c0_5 = arith.constant 0 : index
    %12 = vector.load %arg3[%c0_4, %c0_5] : memref<1x32xf32, #tpu.memory_space<vmem>>, vector<1x32xf32>
    %cst_6 = arith.constant 9.99999974E-6 : f32
    %13 = vector.broadcast %cst_6 : f32 to vector<1x32xf32>
    %14 = arith.addf %11, %13 : vector<1x32xf32>
    %15 = math.rsqrt %14 : vector<1x32xf32>
    %16 = arith.mulf %12, %15 : vector<1x32xf32>
    %c0_7 = arith.constant 0 : index
    %c0_8 = arith.constant 0 : index
    %17 = vector.load %arg5[%c0_7, %c0_8] : memref<1x32xf32, #tpu.memory_space<vmem>>, vector<1x32xf32>
    %18 = vector.broadcast %16 : vector<1x32xf32> to vector<8x32xf32>
    %19 = arith.mulf %6, %18 : vector<8x32xf32>
    %20 = vector.broadcast %17 : vector<1x32xf32> to vector<8x32xf32>
    %21 = arith.addf %19, %20 : vector<8x32xf32>
    %c0_9 = arith.constant 0 : index
    %c0_10 = arith.constant 0 : index
    %22 = vector.load %arg7[%c0_9, %c0_10] : memref<8x32xf32, #tpu.memory_space<vmem>>, vector<8x32xf32>
    tpu.vector_store %arg7[%c0_9, %c0_10], %21 {strides = array<i32>} : memref<8x32xf32, #tpu.memory_space<vmem>>, vector<8x32xf32>,
    %c0_11 = arith.constant 0 : index
    %c0_12 = arith.constant 0 : index
    %23 = vector.load %arg2[%c0_11, %c0_12] : memref<8x32xf32, #tpu.memory_space<vmem>>, vector<8x32xf32>
    %cst_13 = arith.constant dense<0.000000e+00> : vector<32xf32>
    %24 = vector.multi_reduction <add>, %23, %cst_13 [0] : vector<8x32xf32> to vector<32xf32>
    %25 = vector.shape_cast %24 : vector<32xf32> to vector<1x32xf32>
    %cst_14 = arith.constant 8.000000e+00 : f32
    %26 = vector.broadcast %cst_14 : f32 to vector<1x32xf32>
    %27 = arith.divf %25, %26 : vector<1x32xf32>
    %28 = vector.broadcast %27 : vector<1x32xf32> to vector<8x32xf32>
    %29 = arith.subf %23, %28 : vector<8x32xf32>
    %30 = arith.mulf %29, %29 : vector<8x32xf32>
    %cst_15 = arith.constant dense<0.000000e+00> : vector<32xf32>
    %31 = vector.multi_reduction <add>, %30, %cst_15 [0] : vector<8x32xf32> to vector<32xf32>
    %32 = vector.shape_cast %31 : vector<32xf32> to vector<1x32xf32>
    %cst_16 = arith.constant 8.000000e+00 : f32
    %33 = vector.broadcast %cst_16 : f32 to vector<1x32xf32>
    %34 = arith.divf %32, %33 : vector<1x32xf32>
    %c0_17 = arith.constant 0 : index
    %c0_18 = arith.constant 0 : index
    %35 = vector.load %arg4[%c0_17, %c0_18] : memref<1x32xf32, #tpu.memory_space<vmem>>, vector<1x32xf32>
    %cst_19 = arith.constant 9.99999974E-6 : f32
    %36 = vector.broadcast %cst_19 : f32 to vector<1x32xf32>
    %37 = arith.addf %34, %36 : vector<1x32xf32>
    %38 = math.rsqrt %37 : vector<1x32xf32>
    %39 = arith.mulf %35, %38 : vector<1x32xf32>
    %c0_20 = arith.constant 0 : index
    %c0_21 = arith.constant 0 : index
    %40 = vector.load %arg6[%c0_20, %c0_21] : memref<1x32xf32, #tpu.memory_space<vmem>>, vector<1x32xf32>
    %41 = vector.broadcast %39 : vector<1x32xf32> to vector<8x32xf32>
    %42 = arith.mulf %29, %41 : vector<8x32xf32>
    %43 = vector.broadcast %40 : vector<1x32xf32> to vector<8x32xf32>
    %44 = arith.addf %42, %43 : vector<8x32xf32>
    %c0_22 = arith.constant 0 : index
    %c0_23 = arith.constant 0 : index
    %45 = vector.load %arg8[%c0_22, %c0_23] : memref<8x32xf32, #tpu.memory_space<vmem>>, vector<8x32xf32>
    tpu.vector_store %arg8[%c0_22, %c0_23], %44 {strides = array<i32>} : memref<8x32xf32, #tpu.memory_space<vmem>>, vector<8x32xf32>,
    return
  }
  func.func @transform_0(%arg0: i32) -> (i32, i32) {
    %c0_i32 = arith.constant 0 : i32
    %c0_i32_0 = arith.constant 0 : i32
    return %c0_i32, %arg0 : i32, i32
  }
  func.func @transform_1(%arg0: i32) -> (i32, i32) {
    %c0_i32 = arith.constant 0 : i32
    %c0_i32_0 = arith.constant 0 : i32
    return %c0_i32, %arg0 : i32, i32
  }
  func.func @transform_2(%arg0: i32) -> (i32, i32) {
    %c0_i32 = arith.constant 0 : i32
    %c0_i32_0 = arith.constant 0 : i32
    return %c0_i32, %arg0 : i32, i32
  }
  func.func @transform_3(%arg0: i32) -> (i32, i32) {
    %c0_i32 = arith.constant 0 : i32
    %c0_i32_0 = arith.constant 0 : i32
    return %c0_i32, %arg0 : i32, i32
  }
  func.func @transform_4(%arg0: i32) -> (i32, i32) {
    %c0_i32 = arith.constant 0 : i32
    %c0_i32_0 = arith.constant 0 : i32
    return %c0_i32, %arg0 : i32, i32
  }
  func.func @transform_5(%arg0: i32) -> (i32, i32) {
    %c0_i32 = arith.constant 0 : i32
    %c0_i32_0 = arith.constant 0 : i32
    return %c0_i32, %arg0 : i32, i32
  }
  func.func @transform_6(%arg0: i32) -> (i32, i32) {
    %c0_i32 = arith.constant 0 : i32
    %c0_i32_0 = arith.constant 0 : i32
    return %c0_i32, %arg0 : i32, i32
  }
  func.func @transform_7(%arg0: i32) -> (i32, i32) {
    %c0_i32 = arith.constant 0 : i32
    %c0_i32_0 = arith.constant 0 : i32
    return %c0_i32, %arg0 : i32, i32
  }
}

</mosaic_0001>

<llo_original>
// kernel: tpu_custom_call.1
$region0: #{tpu_custom_call.1}
  #allocation0 [shape = 'u32[]', space=smem, size = 0x4, offset = 0x4, fixed_abs, tag = 'smem constant byte address 0x4 - core index']
  #allocation1 [shape = 'u32[144,128]{1,0:T(1,128)}', space=vmem, size = 0x12000, scoped, tag = 'internal scratch']
  %s0 = inlined_call_operand.hbm [shape: f32[8,32], index: 0, kind: input, shape index: {}]
  %s1 = inlined_call_operand.hbm [shape: f32[8,32], index: 1, kind: input, shape index: {}]
  %s2 = inlined_call_operand.vmem [shape: f32[1,32], index: 2, kind: input, shape index: {}]
  %s3 = inlined_call_operand.vmem [shape: f32[1,32], index: 3, kind: input, shape index: {}]
  %s4 = inlined_call_operand.vmem [shape: f32[1,32], index: 4, kind: input, shape index: {}]
  %s5 = inlined_call_operand.vmem [shape: f32[1,32], index: 5, kind: input, shape index: {}]
  %s6 = inlined_call_operand.hbm [shape: f32[8,32], index: 6, kind: output, shape index: {0}]
  %s7 = inlined_call_operand.hbm [shape: f32[8,32], index: 7, kind: output, shape index: {1}]
  %8 = xla_tuple %s6, %s7
  %s9 = sld [smem:[#allocation0]]
  $region50: #{tpu_custom_call.1} parent=0
    _
  %s11 = ssub.s32 1, %s9
  %s12 = scalar_select 0, %s11, %s9
  $region1: #{tpu_custom_call.1} parent=0
    #allocation2 [shape = 'u8[4096]{0}', space=vmem, size = 0x1000, scoped, tag = 'input window, operand 0, single buffered']
    #allocation3 [shape = 's32[1]{0}', space=sflag, size = 0x4, scoped, tag = 'scoped memory for tpu_custom_call.1']
    #allocation4 [shape = 's32[1]{0}', space=sflag, size = 0x4, scoped, tag = 'scoped memory for tpu_custom_call.1']
    #allocation5 [shape = 'u8[4096]{0}', space=vmem, size = 0x1000, scoped, tag = 'input window, operand 1, single buffered']
    #allocation6 [shape = 's32[1]{0}', space=sflag, size = 0x4, scoped, tag = 'scoped memory for tpu_custom_call.1']
    #allocation7 [shape = 'u8[4096]{0}', space=vmem, size = 0x1000, scoped, tag = 'output window, operand 0, single buffered']
    #allocation8 [shape = 'u8[4096]{0}', space=vmem, size = 0x1000, scoped, tag = 'output window, operand 1, single buffered']
    #allocation9 [shape = 's32[1]{0}', space=sflag, size = 0x4, scoped, tag = 'scoped memory for tpu_custom_call.1']
    %13 = vsyncpa [#allocation3], 0
    %14 = vsyncpa [#allocation6], 0
    %15 = vsyncpa [#allocation4], 0
    %16 = vsyncpa [#allocation9], 0
    // Predicated region
    $region2: #{tpu_custom_call.1} parent=1 // pred_check
      _
    $region3: #{tpu_custom_call.1} parent=1 // pred_check_branch
      %18 = sbr.rel (0) target = $region5
    $region4: #{tpu_custom_call.1} parent=1 // pred_region
      %s20 = ssub.s32 128, 128
      %21 = vsyncadd [#allocation3], %s20
      %s23 = sshll.u32 [#allocation2], 4
      %s24 = int_to_ptr.vmem [resolvable:$true] %s23
      %26 = dma.hbm_to_vmem [thread:$0]  %s0, 128, %s24, [#allocation3]
    $region5: #{tpu_custom_call.1} parent=1 // pred_fallthru
      _
    // Predicated region
    $region6: #{tpu_custom_call.1} parent=1 // pred_check
      _
    $region7: #{tpu_custom_call.1} parent=1 // pred_check_branch
      %28 = sbr.rel (0) target = $region9
    $region8: #{tpu_custom_call.1} parent=1 // pred_region
      %s30 = ssub.s32 128, 128
      %31 = vsyncadd [#allocation6], %s30
      %s33 = sshll.u32 [#allocation5], 4
      %s34 = int_to_ptr.vmem [resolvable:$true] %s33
      %36 = dma.hbm_to_vmem [thread:$0]  %s1, 128, %s34, [#allocation6]
    $region9: #{tpu_custom_call.1} parent=1 // pred_fallthru
      _
    // Predicated region
    $region10: #{tpu_custom_call.1} parent=1 // pred_check
      _
    $region11: #{tpu_custom_call.1} parent=1 // pred_check_branch
      %38 = sbr.rel (0) target = $region13
    $region12: #{tpu_custom_call.1} parent=1 // pred_region
      _
    $region13: #{tpu_custom_call.1} parent=1 // pred_fallthru
      _
    // Predicated region
    $region14: #{tpu_custom_call.1} parent=1 // pred_check
      _
    $region15: #{tpu_custom_call.1} parent=1 // pred_check_branch
      %40 = sbr.rel (0) target = $region17
    $region16: #{tpu_custom_call.1} parent=1 // pred_region
      _
    $region17: #{tpu_custom_call.1} parent=1 // pred_fallthru
      _
    // Predicated region
    $region18: #{tpu_custom_call.1} parent=1 // pred_check
      _
    $region19: #{tpu_custom_call.1} parent=1 // pred_check_branch
      %42 = sbr.rel (0) target = $region21
    $region20: #{tpu_custom_call.1} parent=1 // pred_region
      _
    $region21: #{tpu_custom_call.1} parent=1 // pred_fallthru
      _
    // Predicated region
    $region22: #{tpu_custom_call.1} parent=1 // pred_check
      _
    $region23: #{tpu_custom_call.1} parent=1 // pred_check_branch
      %44 = sbr.rel (0) target = $region25
    $region24: #{tpu_custom_call.1} parent=1 // pred_region
      _
    $region25: #{tpu_custom_call.1} parent=1 // pred_fallthru
      _
    // Predicated region
    $region26: #{tpu_custom_call.1} parent=1 // pred_check
      _
    $region27: #{tpu_custom_call.1} parent=1 // pred_check_branch
      %46 = sbr.rel (0) target = $region29
    $region28: #{tpu_custom_call.1} parent=1 // pred_region
      %47 = dma.done [#allocation3], 128
    $region29: #{tpu_custom_call.1} parent=1 // pred_fallthru
      _
    // Predicated region
    $region30: #{tpu_custom_call.1} parent=1 // pred_check
      _
    $region31: #{tpu_custom_call.1} parent=1 // pred_check_branch
      %49 = sbr.rel (0) target = $region33
    $region32: #{tpu_custom_call.1} parent=1 // pred_region
      %50 = dma.done [#allocation6], 128
    $region33: #{tpu_custom_call.1} parent=1 // pred_fallthru
      _
    %v51 = vld [vmem:[#allocation2] sm:$0xff]
    %vm52 = vcmask 261120
    %v53 = vsel %vm52, %v51, 0.0
    %v54 = vrot.slane %v53, 4
    %v55 = vadd.f32 %v53, %v54
    %v56 = vrot.slane %v55, 2
    %v57 = vadd.f32 %v55, %v56
    %v58 = vrot.slane %v57, 1
    %v59 = vadd.f32 %v57, %v58
    %v60 = vrcp.pop 8.0
    %v61 = vmul.f32 %v59, %v60
    %v62 = vsub.f32 %v51, %v61
    %v63 = vmul.f32 %v62, %v62
    %v64 = vsel %vm52, %v63, 0.0
    %v65 = vrot.slane %v64, 4
    %v66 = vadd.f32 %v64, %v65
    %v67 = vrot.slane %v66, 2
    %v68 = vadd.f32 %v66, %v67
    %v69 = vrot.slane %v68, 1
    %v70 = vadd.f32 %v68, %v69
    %v71 = vmul.f32 %v70, %v60
    %v72 = vld [vmem:[%s2] sm:$0x1]
    %v73 = vadd.f32 %v71, 1e-05
    %v74 = vrsqrt.pop %v73
    %v75 = vmul.f32 %v72, %v74
    %v76 = vld [vmem:[%s4] sm:$0x1]
    %v78 = vlaneseq
    %v79 = vshrl.u32 %v78, 7
    %v80 = vsub.s32 0, %v79
    %v81 = vrot.slane %v75, %v80
    %v83 = vmul.f32 %v62, %v81
    %v85 = vlaneseq
    %v86 = vshrl.u32 %v85, 7
    %v87 = vsub.s32 0, %v86
    %v88 = vrot.slane %v76, %v87
    %v90 = vadd.f32 %v83, %v88
    %91 = vst.msk [vmem:[#allocation7] sm:$0xff] %vm52, %v90
    %v92 = vld [vmem:[#allocation5] sm:$0xff]
    %v93 = vsel %vm52, %v92, 0.0
    %v94 = vrot.slane %v93, 4
    %v95 = vadd.f32 %v93, %v94
    %v96 = vrot.slane %v95, 2
    %v97 = vadd.f32 %v95, %v96
    %v98 = vrot.slane %v97, 1
    %v99 = vadd.f32 %v97, %v98
    %v100 = vmul.f32 %v99, %v60
    %v101 = vsub.f32 %v92, %v100
    %v102 = vmul.f32 %v101, %v101
    %v103 = vsel %vm52, %v102, 0.0
    %v104 = vrot.slane %v103, 4
    %v105 = vadd.f32 %v103, %v104
    %v106 = vrot.slane %v105, 2
    %v107 = vadd.f32 %v105, %v106
    %v108 = vrot.slane %v107, 1
    %v109 = vadd.f32 %v107, %v108
    %v110 = vmul.f32 %v109, %v60
    %v111 = vld [vmem:[%s3] sm:$0x1]
    %v112 = vadd.f32 %v110, 1e-05
    %v113 = vrsqrt.pop %v112
    %v114 = vmul.f32 %v111, %v113
    %v115 = vld [vmem:[%s5] sm:$0x1]
    %v117 = vlaneseq
    %v118 = vshrl.u32 %v117, 7
    %v119 = vsub.s32 0, %v118
    %v120 = vrot.slane %v114, %v119
    %v122 = vmul.f32 %v101, %v120
    %v124 = vlaneseq
    %v125 = vshrl.u32 %v124, 7
    %v126 = vsub.s32 0, %v125
    %v127 = vrot.slane %v115, %v126
    %v129 = vadd.f32 %v122, %v127
    %130 = vst.msk [vmem:[#allocation8] sm:$0xff] %vm52, %v129
    // Predicated region
    $region34: #{tpu_custom_call.1} parent=1 // pred_check
      _
    $region35: #{tpu_custom_call.1} parent=1 // pred_check_branch
      %132 = sbr.rel (0) target = $region37
    $region36: #{tpu_custom_call.1} parent=1 // pred_region
      %s134 = ssub.s32 128, 128
      %135 = vsyncadd [#allocation4], %s134
      %s137 = sshll.u32 [#allocation7], 4
      %s138 = int_to_ptr.vmem [resolvable:$true] %s137
      %140 = dma.vmem_to_hbm [thread:$0]  %s138, 128, %s6, [#allocation4]
    $region37: #{tpu_custom_call.1} parent=1 // pred_fallthru
      _
    // Predicated region
    $region38: #{tpu_custom_call.1} parent=1 // pred_check
      _
    $region39: #{tpu_custom_call.1} parent=1 // pred_check_branch
      %142 = sbr.rel (0) target = $region41
    $region40: #{tpu_custom_call.1} parent=1 // pred_region
      %s144 = ssub.s32 128, 128
      %145 = vsyncadd [#allocation9], %s144
      %s147 = sshll.u32 [#allocation8], 4
      %s148 = int_to_ptr.vmem [resolvable:$true] %s147
      %150 = dma.vmem_to_hbm [thread:$0]  %s148, 128, %s7, [#allocation9]
    $region41: #{tpu_custom_call.1} parent=1 // pred_fallthru
      _
    // Predicated region
    $region42: #{tpu_custom_call.1} parent=1 // pred_check
      _
    $region43: #{tpu_custom_call.1} parent=1 // pred_check_branch
      %152 = sbr.rel (0) target = $region45
    $region44: #{tpu_custom_call.1} parent=1 // pred_region
      %153 = dma.done [#allocation4], 128
    $region45: #{tpu_custom_call.1} parent=1 // pred_fallthru
      _
    // Predicated region
    $region46: #{tpu_custom_call.1} parent=1 // pred_check
      _
    $region47: #{tpu_custom_call.1} parent=1 // pred_check_branch
      %155 = sbr.rel (0) target = $region49
    $region48: #{tpu_custom_call.1} parent=1 // pred_region
      %156 = dma.done [#allocation9], 128
    $region49: #{tpu_custom_call.1} parent=1 // pred_fallthru
      _
    %157 = vsyncpa [#allocation3], 1
    %158 = vsyncpa [#allocation6], 1
    %159 = vsyncpa [#allocation4], 1
    %160 = vsyncpa [#allocation9], 1

</llo_original>
